<compile_context>
chip_gen: v7x
topology: tpu7x:2x2x1
jax: 0.10.0
libtpu: 0.0.40
codegen_flags: <defaults>
</compile_context>

<pallas_src>
import functools
import math

import jax
import jax.numpy as jnp
from jax.experimental import pallas as pl
from jax.experimental.pallas import tpu as pltpu


def _idiv_const(x, c: int):
    """Integer divide by a static constant; power-of-two -> shift (no VPU divide)."""
    if c & (c - 1) == 0:
        return x >> (c.bit_length() - 1)
    return x // c


def mha_kernel(x_ref, w_ref, b_ref, maskadd_ref, out_ref, *, heads, d_model, rows):
    """Fused MHA forward, single grid step.

    x_ref:       (B*S, 3D)     fused input [k | q | v] along lanes   (compute dtype)
    w_ref:       (4D, 3D)      rows 0:3D  = block-diag(Wk, Wq*scale, Wv)
                               rows 3D:4D = Wo in lanes 0:D          (compute dtype)
    b_ref:       (1, 4D)       [bk | bq*scale | bv | bo]             (f32, lane dense)
    maskadd_ref: (H*B*S, B*S)  additive attention mask 0 / -1e30     (f32)
    out_ref:     (B*S, D)      f32
    """
    D = d_model
    d_k = D // heads
    n_big = heads * rows
    f32 = jnp.float32
    cdt = x_ref.dtype                     # MXU operand dtype (f32 or bf16)

    # ---- fused QKV projection: one MXU matmul + one f32 bias add ---------------------
    w_qkv = w_ref[0:3 * D, :]             # sublane slice at offset 0 (free)
    b_qkv = b_ref[:, 0:3 * D]
    qkv = jnp.dot(x_ref[...], w_qkv, preferred_element_type=f32) + b_qkv
    qkv_c = qkv.astype(cdt)               # single convert; q/k/v derive from this copy
    k = qkv_c[:, 0:D]                     # lane offset 0 -> no rotate for scores RHS
    q = qkv_c[:, D:2 * D]                 # 1/sqrt(d_k) already folded into Wq/bq
    v = qkv_c[:, 2 * D:3 * D]

    # ---- static head-lane selector (no integer divides: rows, d_k are powers of two) --
    # "Big" row r corresponds to (head = r >> log2(rows), token = r % rows).
    row_head = _idiv_const(jax.lax.broadcasted_iota(jnp.int32, (n_big, D), 0), rows)
    col_head = _idiv_const(jax.lax.broadcasted_iota(jnp.int32, (n_big, D), 1), d_k)
    hsel = row_head == col_head                               # (H*B*S, D) bool

    # ---- batch all heads into the row dimension (broadcast, NOT sublane concatenate) --
    q_rep = jnp.broadcast_to(q[None], (heads, rows, D)).reshape(n_big, D)
    q_big = jnp.where(hsel, q_rep, 0.0)                       # other heads' lanes -> 0

    # scores[(h,t), t'] = <Q_h[t], K_h[t']>; one MXU matmul, transposed RHS (k, offset 0)
    scores = jax.lax.dot_general(q_big, k, (((1,), (1,)), ((), ())),
                                 preferred_element_type=f32)  # (H*B*S, B*S)
    scores = scores + maskadd_ref[...]     # cross-batch + padded keys -> -1e30

    # ---- softmax over keys, per (head, token) row, in f32 -----------------------------
    smax = jnp.max(scores, axis=-1, keepdims=True)
    p = jnp.exp(scores - smax)             # masked entries underflow to 0 (if row has a
    denom = jnp.sum(p, axis=-1, keepdims=True)   # valid key; fully-masked rows -> uniform)
    r = pl.reciprocal(denom, approx=True)  # EUP slot, off the VALU critical path
    r = r * (2.0 - denom * r)              # one Newton step -> ~f32 accuracy
    w = (p * r).astype(cdt)
    # TODO(synk): attention-weight dropout omitted (kernel implements eval-mode forward).

    # ---- context: one matmul for all heads, fold head row-blocks back -----------------
    ctx_big = jnp.dot(w, v, preferred_element_type=f32)       # (H*B*S, D)
    ctx_big = jnp.where(hsel, ctx_big, 0.0)                   # keep own head's lanes
    ctx = ctx_big[0:rows, :]
    for h in range(1, heads):              # aligned sublane-slice adds (cheap VPU)
        ctx = ctx + ctx_big[h * rows:(h + 1) * rows, :]

    # ---- output projection --------------------------------------------------------------
    wo = w_ref[3 * D:4 * D, 0:D]           # sublane offset 3D (8/16-aligned) -> free slice
    bo = b_ref[:, 3 * D:4 * D]
    out = jnp.dot(ctx.astype(cdt), wo, preferred_element_type=f32) + bo
    out_ref[...] = out.astype(out_ref.dtype)


def pack_mha_params(params, *, heads, compute_dtype=jnp.float32):
    """One-time parameter preprocessing: fuse Wk/Wq/Wv block-diagonally (input order k|q|v),
    fold the 1/sqrt(d_k) scale into the Q projection, stack Wo into spare rows of the same
    slab, and fuse all four biases into one lane-dense (1, 4D) slab."""
    D = params["wq"].shape[0]
    d_k = D // heads
    scale = 1.0 / math.sqrt(d_k)
    w_big = jnp.zeros((4 * D, 3 * D), jnp.float32)
    w_big = w_big.at[0:D, 0:D].set(params["wk"])
    w_big = w_big.at[D:2 * D, D:2 * D].set(params["wq"] * scale)
    w_big = w_big.at[2 * D:3 * D, 2 * D:3 * D].set(params["wv"])
    w_big = w_big.at[3 * D:4 * D, 0:D].set(params["wo"])
    b_big = jnp.concatenate(
        [params["bk"], params["bq"] * scale, params["bv"], params["bo"]]).reshape(1, 4 * D)
    return {
        "w_big": w_big.astype(compute_dtype),
        "b_big": b_big.astype(jnp.float32),          # biases stay f32
    }


@functools.partial(jax.jit, static_argnames=("heads", "compute_dtype"))
def multi_headed_attention(q, k, v, mask, packed, *, heads, compute_dtype=jnp.float32):
    """q, k, v: (B, S, D) f32; mask: (B, 1, 1, S), 1 = attend; packed: pack_mha_params()."""
    B, S, D = q.shape
    assert D % heads == 0
    rows = B * S

    # Lane-dense fused input (B*S, 3D), ordered [k | q | v] so K is the lane-offset-0 slice.
    x_cat = jnp.concatenate(
        [k.reshape(rows, D), q.reshape(rows, D), v.reshape(rows, D)], axis=-1
    ).astype(compute_dtype)

    # Additive attention mask (H*B*S, B*S): 0 where (same batch AND key kept), else -1e30.
    key_keep = mask.reshape(rows) > 0                      # column (b', s')
    col_batch = jnp.arange(rows, dtype=jnp.int32) // S
    row_batch = jnp.tile(col_batch, heads)                 # big rows are head-major
    valid = (row_batch[:, None] == col_batch[None, :]) & key_keep[None, :]
    mask_add = jnp.where(valid, 0.0, -1e30).astype(jnp.float32)

    # TODO(synk): for production sizes, add a 'parallel' row-tile grid axis (v7x 2nd TC) and
    # tile the key dim flash-style instead of the dense (H*rows, rows) mask; at rows=16 the
    # single-step, all-in-VMEM design is the right one on v5e/v6e/v7x.
    kernel = functools.partial(mha_kernel, heads=heads, d_model=D, rows=rows)
    vmem = pl.BlockSpec(memory_space=pltpu.MemorySpace.VMEM)   # whole arrays in VMEM
    out = pl.pallas_call(
        kernel,
        out_shape=jax.ShapeDtypeStruct((rows, D), jnp.float32),
        in_specs=[vmem] * 4,
        out_specs=vmem,
    )(x_cat, packed["w_big"], packed["b_big"], mask_add)
    return out.reshape(B, S, D)


def reference_mha(q, k, v, mask, params, *, heads):
    """Pure-JAX reference matching the PyTorch forward (eval mode)."""
    B, S, D = q.shape
    d_k = D // heads
    Q = q @ params["wq"] + params["bq"]
    K = k @ params["wk"] + params["bk"]
    V = v @ params["wv"] + params["bv"]
    Q = Q.reshape(B, S, heads, d_k).transpose(0, 2, 1, 3)
    K = K.reshape(B, S, heads, d_k).transpose(0, 2, 1, 3)
    V = V.reshape(B, S, heads, d_k).transpose(0, 2, 1, 3)
    scores = jnp.einsum("bhqd,bhkd->bhqk", Q, K) / math.sqrt(d_k)
    scores = jnp.where(mask == 0, -jnp.inf, scores)
    w = jax.nn.softmax(scores, axis=-1)
    ctx = jnp.einsum("bhqk,bhkd->bhqd", w, V)
    ctx = ctx.transpose(0, 2, 1, 3).reshape(B, S, D)
    return ctx @ params["wo"] + params["bo"]


if __name__ == "__main__":
    B, S, D, H = 2, 8, 32, 4
    key = jax.random.PRNGKey(0)
    keys = jax.random.split(key, 12)

    q = jax.random.normal(keys[0], (B, S, D), dtype=jnp.float32)
    k = jax.random.normal(keys[1], (B, S, D), dtype=jnp.float32)
    v = jax.random.normal(keys[2], (B, S, D), dtype=jnp.float32)

    # mask: (B, 1, 1, S), 1 = attend, 0 = masked (last two positions of batch 1 padded)
    mask = jnp.ones((B, 1, 1, S), dtype=jnp.float32)
    mask = mask.at[1, 0, 0, S - 2:].set(0.0)

    def linear_init(kw, kb, fan_in, fan_out):
        bound = 1.0 / math.sqrt(fan_in)
        w = jax.random.uniform(kw, (fan_in, fan_out), minval=-bound, maxval=bound,
                               dtype=jnp.float32)
        b = jax.random.uniform(kb, (fan_out,), minval=-bound, maxval=bound,
                               dtype=jnp.float32)
        return w, b

    wq, bq = linear_init(keys[3], keys[4], D, D)
    wk, bk = linear_init(keys[5], keys[6], D, D)
    wv, bv = linear_init(keys[7], keys[8], D, D)
    wo, bo = linear_init(keys[9], keys[10], D, D)
    params = dict(wq=wq, bq=bq, wk=wk, bk=bk, wv=wv, bv=bv, wo=wo, bo=bo)

    ref = reference_mha(q, k, v, mask, params, heads=H)

    # f32 path (default; correct on all generations)
    packed_f32 = pack_mha_params(params, heads=H, compute_dtype=jnp.float32)
    out = multi_headed_attention(q, k, v, mask, packed_f32, heads=H,
                                 compute_dtype=jnp.float32)
    out = jax.block_until_ready(out)
    assert out.shape == (B, S, D)
    assert jnp.allclose(out, ref, atol=1e-3, rtol=1e-3), "f32 kernel mismatch vs reference"

    # bf16 MXU-operand path (f32 accumulate + softmax); MXU bf16 is fine on v5e/v6e/v7x.
    packed_bf16 = pack_mha_params(params, heads=H, compute_dtype=jnp.bfloat16)
    out_bf16 = multi_headed_attention(q, k, v, mask, packed_bf16, heads=H,
                                      compute_dtype=jnp.bfloat16)
    out_bf16 = jax.block_until_ready(out_bf16)
    assert jnp.allclose(out_bf16, ref, atol=5e-2, rtol=5e-2), "bf16 kernel mismatch"

    print("KERNEL_OK")
</pallas_src>

<mosaic_0001>
module attributes {stable_mosaic.version = 11 : i64} {
  func.func @mha_kernel(%arg0: memref<16x96xf32, #tpu.memory_space<vmem>>, %arg1: memref<128x96xf32, #tpu.memory_space<vmem>>, %arg2: memref<1x128xf32, #tpu.memory_space<vmem>>, %arg3: memref<64x16xf32, #tpu.memory_space<vmem>>, %arg4: memref<16x32xf32, #tpu.memory_space<vmem>>) attributes {dimension_semantics = [], scalar_prefetch = 0 : i64, scratch_operands = 0 : i64, tpu.core_type = #tpu.core_type<tc>} {
    %c0 = arith.constant 0 : index
    %c0_0 = arith.constant 0 : index
    %0 = vector.load %arg1[%c0, %c0_0] : memref<128x96xf32, #tpu.memory_space<vmem>>, vector<96x96xf32>
    %c0_1 = arith.constant 0 : index
    %c0_2 = arith.constant 0 : index
    %1 = vector.load %arg2[%c0_1, %c0_2] : memref<1x128xf32, #tpu.memory_space<vmem>>, vector<1x96xf32>
    %c0_3 = arith.constant 0 : index
    %c0_4 = arith.constant 0 : index
    %2 = vector.load %arg0[%c0_3, %c0_4] : memref<16x96xf32, #tpu.memory_space<vmem>>, vector<16x96xf32>
    %cst = arith.constant dense<0.000000e+00> : vector<16x96xf32>
    %3 = tpu.matmul %2, %0, %cst {dimension_numbers = #tpu.dot_dimension_numbers<[1], [0], [0], [1], [0, 0, 1, 1], [], []>} : vector<16x96xf32>, vector<96x96xf32>, vector<16x96xf32> -> vector<16x96xf32>
    %4 = vector.broadcast %1 : vector<1x96xf32> to vector<16x96xf32>
    %5 = arith.addf %3, %4 : vector<16x96xf32>
    %6 = vector.extract_strided_slice %5 {offsets = [0, 0], sizes = [16, 32], strides = [1, 1]} : vector<16x96xf32> to vector<16x32xf32>
    %7 = vector.extract_strided_slice %5 {offsets = [0, 32], sizes = [16, 32], strides = [1, 1]} : vector<16x96xf32> to vector<16x32xf32>
    %8 = vector.extract_strided_slice %5 {offsets = [0, 64], sizes = [16, 32], strides = [1, 1]} : vector<16x96xf32> to vector<16x32xf32>
    %9 = tpu.iota {dimensions = array<i32: 0>} : vector<64x32xi32>
    %c4_i32 = arith.constant 4 : i32
    %10 = vector.broadcast %c4_i32 : i32 to vector<64x32xi32>
    %11 = arith.shrsi %9, %10 : vector<64x32xi32>
    %12 = tpu.iota {dimensions = array<i32: 1>} : vector<64x32xi32>
    %c3_i32 = arith.constant 3 : i32
    %13 = vector.broadcast %c3_i32 : i32 to vector<64x32xi32>
    %14 = arith.shrsi %12, %13 : vector<64x32xi32>
    %15 = arith.cmpi eq, %11, %14 : vector<64x32xi32>
    %16 = vector.shape_cast %7 : vector<16x32xf32> to vector<1x16x32xf32>
    %17 = vector.shape_cast %16 : vector<1x16x32xf32> to vector<1x16x32xf32>
    %18 = vector.broadcast %17 : vector<1x16x32xf32> to vector<4x16x32xf32>
    %19 = vector.shape_cast %18 : vector<4x16x32xf32> to vector<64x32xf32>
    %cst_5 = arith.constant 0.000000e+00 : f32
    %20 = vector.broadcast %cst_5 : f32 to vector<64x32xf32>
    %21 = arith.select %15, %19, %20 : vector<64x32xi1>, vector<64x32xf32>
    %cst_6 = arith.constant dense<0.000000e+00> : vector<64x16xf32>
    %22 = tpu.matmul %21, %6, %cst_6 {dimension_numbers = #tpu.dot_dimension_numbers<[1], [1], [0], [0], [0, 0, 1, 0], [], []>} : vector<64x32xf32>, vector<16x32xf32>, vector<64x16xf32> -> vector<64x16xf32>
    %c0_7 = arith.constant 0 : index
    %c0_8 = arith.constant 0 : index
    %23 = vector.load %arg3[%c0_7, %c0_8] : memref<64x16xf32, #tpu.memory_space<vmem>>, vector<64x16xf32>
    %24 = arith.addf %22, %23 : vector<64x16xf32>
    %cst_9 = arith.constant dense<0xFF800000> : vector<64xf32>
    %25 = vector.multi_reduction <maximumf>, %24, %cst_9 [1] : vector<64x16xf32> to vector<64xf32>
    %26 = vector.shape_cast %25 : vector<64xf32> to vector<64x1xf32>
    %27 = vector.broadcast %26 : vector<64x1xf32> to vector<64x16xf32>
    %28 = arith.subf %24, %27 : vector<64x16xf32>
    %29 = math.exp %28 : vector<64x16xf32>
    %cst_10 = arith.constant dense<0.000000e+00> : vector<64xf32>
    %30 = vector.multi_reduction <add>, %29, %cst_10 [1] : vector<64x16xf32> to vector<64xf32>
    %31 = vector.shape_cast %30 : vector<64xf32> to vector<64x1xf32>
    %32 = tpu.reciprocal %31 {approx = true} : vector<64x1xf32> -> vector<64x1xf32>
    %33 = arith.mulf %31, %32 : vector<64x1xf32>
    %cst_11 = arith.constant 2.000000e+00 : f32
    %34 = vector.broadcast %cst_11 : f32 to vector<64x1xf32>
    %35 = arith.subf %34, %33 : vector<64x1xf32>
    %36 = arith.mulf %32, %35 : vector<64x1xf32>
    %37 = vector.broadcast %36 : vector<64x1xf32> to vector<64x16xf32>
    %38 = arith.mulf %29, %37 : vector<64x16xf32>
    %cst_12 = arith.constant dense<0.000000e+00> : vector<64x32xf32>
    %39 = tpu.matmul %38, %8, %cst_12 {dimension_numbers = #tpu.dot_dimension_numbers<[1], [0], [0], [1], [0, 0, 1, 1], [], []>} : vector<64x16xf32>, vector<16x32xf32>, vector<64x32xf32> -> vector<64x32xf32>
    %cst_13 = arith.constant 0.000000e+00 : f32
    %40 = vector.broadcast %cst_13 : f32 to vector<64x32xf32>
    %41 = arith.select %15, %39, %40 : vector<64x32xi1>, vector<64x32xf32>
    %42 = vector.extract_strided_slice %41 {offsets = [0, 0], sizes = [16, 32], strides = [1, 1]} : vector<64x32xf32> to vector<16x32xf32>
    %43 = vector.extract_strided_slice %41 {offsets = [16, 0], sizes = [16, 32], strides = [1, 1]} : vector<64x32xf32> to vector<16x32xf32>
    %44 = arith.addf %42, %43 : vector<16x32xf32>
    %45 = vector.extract_strided_slice %41 {offsets = [32, 0], sizes = [16, 32], strides = [1, 1]} : vector<64x32xf32> to vector<16x32xf32>
    %46 = arith.addf %44, %45 : vector<16x32xf32>
    %47 = vector.extract_strided_slice %41 {offsets = [48, 0], sizes = [16, 32], strides = [1, 1]} : vector<64x32xf32> to vector<16x32xf32>
    %48 = arith.addf %46, %47 : vector<16x32xf32>
    %c96 = arith.constant 96 : index
    %c0_14 = arith.constant 0 : index
    %49 = vector.load %arg1[%c96, %c0_14] : memref<128x96xf32, #tpu.memory_space<vmem>>, vector<32x32xf32>
    %c0_15 = arith.constant 0 : index
    %c96_16 = arith.constant 96 : index
    %50 = vector.load %arg2[%c0_15, %c96_16] : memref<1x128xf32, #tpu.memory_space<vmem>>, vector<1x32xf32>
    %cst_17 = arith.constant dense<0.000000e+00> : vector<16x32xf32>
    %51 = tpu.matmul %48, %49, %cst_17 {dimension_numbers = #tpu.dot_dimension_numbers<[1], [0], [0], [1], [0, 0, 1, 1], [], []>} : vector<16x32xf32>, vector<32x32xf32>, vector<16x32xf32> -> vector<16x32xf32>
    %52 = vector.broadcast %50 : vector<1x32xf32> to vector<16x32xf32>
    %53 = arith.addf %51, %52 : vector<16x32xf32>
    %c0_18 = arith.constant 0 : index
    %c0_19 = arith.constant 0 : index
    %54 = vector.load %arg4[%c0_18, %c0_19] : memref<16x32xf32, #tpu.memory_space<vmem>>, vector<16x32xf32>
    tpu.vector_store %arg4[%c0_18, %c0_19], %53 {strides = array<i32>} : memref<16x32xf32, #tpu.memory_space<vmem>>, vector<16x32xf32>,
    return
  }
}

</mosaic_0001>

<llo_original>
// kernel: tile.8
$region0: #{tile.8}
  #allocation0 [shape = 's32[1]{0}', space=sflag, size = 0x4, scoped, tag = 'scoped memory for tile.8']
  %s0 = inlined_call_operand.vmem [shape: s32[16], index: 0, kind: input, shape index: {}]
  %s1 = inlined_call_operand.vmem [shape: s32[4,16], index: 1, kind: output, shape index: {}]
  // Predicated region
  $region2: #{tile.8} parent=0 // pred_check
    _
  $region3: #{tile.8} parent=0 // pred_check_branch
    %3 = sbr.rel (0) target = $region5
  $region4: #{tile.8} parent=0 // pred_region
    _
  $region5: #{tile.8} parent=0 // pred_fallthru
    _
  %v4 = vld [vmem:[%s0] ss:$0 sm:$0xff]
  %5 = vst [vmem:[%s1] sm:$0xf] %v4

// kernel: eq.8
$region0: #{eq.8}
  %s0 = inlined_call_operand.vmem [shape: s32[4,16], index: 0, kind: input, shape index: {}]
  %s1 = inlined_call_operand.vmem [shape: s32[64], index: 1, kind: output, shape index: {}]
  $region1: #{eq.8} parent=0
    #allocation0 [shape = 'u8[4096]{0}', space=vmem, size = 0x1000, scoped, tag = 'scoped mem for output reshape']
    #allocation1 [shape = 'u8[4096]{0}', space=vmem, size = 0x1000, scoped, tag = 'scoped mem for input reshape']
    %s3 = sshllo.u32 0, 4
    %v4 = vld [vmem:[%s0] sm:%s3]
    %5 = vst [vmem:[#allocation1] sm:%s3] %v4
    %v6 = vld [vmem:[#allocation1] sm:$0x1]
    %vm7 = vcmask 130048
    %8 = vst.msk [vmem:[#allocation0] sm:$0x1] %vm7, %v6
    %s9 = scalar_lea.vmem [#allocation1], 3
    %v10 = vld [vmem:[%s9] sm:$0x1]
    %11 = vrot.lane.b32.xlu0 %v10, 48
    %v12 = vpop.permute.xlu0 %11
    %vm13 = vcmask 523648
    %14 = vst.msk [vmem:[#allocation0] sm:$0x1] %vm13, %v12
    %s15 = scalar_lea.vmem [#allocation1], 2
    %v16 = vld [vmem:[%s15] sm:$0x1]
    %17 = vrot.lane.b32.xlu0 %v16, 32
    %v18 = vpop.permute.xlu0 %17
    %vm19 = vcmask 392448
    %20 = vst.msk [vmem:[#allocation0] sm:$0x1] %vm19, %v18
    %s21 = scalar_lea.vmem [#allocation1], 1
    %v22 = vld [vmem:[%s21] sm:$0x1]
    %23 = vrot.lane.b32.xlu0 %v22, 16
    %v24 = vpop.permute.xlu0 %23
    %vm25 = vcmask 261248
    %26 = vst.msk [vmem:[#allocation0] sm:$0x1] %vm25, %v24
    %s28 = sshllo.u32 0, 1
    %v30 = vld [vmem:[#allocation0] sm:%s28]
    %s31 = sshllo.u32 0, 1
    %32 = vst [vmem:[%s1] sm:%s31] %v30

// kernel: multi_headed_attention.1
$region0: #{multi_headed_attention.1}
  #allocation0 [shape = 'u32[]', space=smem, size = 0x4, offset = 0x4, fixed_abs, tag = 'smem constant byte address 0x4 - core index']
  #allocation1 [shape = 'u32[144,128]{1,0:T(1,128)}', space=vmem, size = 0x12000, scoped, tag = 'internal scratch']
  %s0 = inlined_call_operand.vmem [shape: f32[16,96], index: 0, kind: input, shape index: {}]
  %s1 = inlined_call_operand.vmem [shape: f32[128,96], index: 1, kind: input, shape index: {}]
  %s2 = inlined_call_operand.vmem [shape: f32[1,128], index: 2, kind: input, shape index: {}]
  %s3 = inlined_call_operand.vmem [shape: f32[64,16], index: 3, kind: input, shape index: {}]
  %s4 = inlined_call_operand.hbm [shape: f32[16,32], index: 4, kind: output, shape index: {}]
  %s5 = sld [smem:[#allocation0]]
  $region26: #{multi_headed_attention.1} parent=0
    _
  %s7 = ssub.s32 1, %s5
  %s8 = scalar_select 0, %s7, %s5
  $region1: #{multi_headed_attention.1} parent=0
    #allocation2 [shape = 'u8[8192]{0}', space=vmem, size = 0x2000, scoped, tag = 'output window, operand 0, single buffered']
    #allocation3 [shape = 's32[1]{0}', space=sflag, size = 0x4, scoped, tag = 'scoped memory for multi_headed_attention.1']
    %9 = vsyncpa [#allocation3], 0
    // Predicated region
    $region2: #{multi_headed_attention.1} parent=1 // pred_check
      _
    $region3: #{multi_headed_attention.1} parent=1 // pred_check_branch
      %11 = sbr.rel (0) target = $region5
    $region4: #{multi_headed_attention.1} parent=1 // pred_region
      _
    $region5: #{multi_headed_attention.1} parent=1 // pred_fallthru
      _
    // Predicated region
    $region6: #{multi_headed_attention.1} parent=1 // pred_check
      _
    $region7: #{multi_headed_attention.1} parent=1 // pred_check_branch
      %13 = sbr.rel (0) target = $region9
    $region8: #{multi_headed_attention.1} parent=1 // pred_region
      _
    $region9: #{multi_headed_attention.1} parent=1 // pred_fallthru
      _
    // Predicated region
    $region10: #{multi_headed_attention.1} parent=1 // pred_check
      _
    $region11: #{multi_headed_attention.1} parent=1 // pred_check_branch
      %15 = sbr.rel (0) target = $region13
    $region12: #{multi_headed_attention.1} parent=1 // pred_region
      _
    $region13: #{multi_headed_attention.1} parent=1 // pred_fallthru
      _
    // Predicated region
    $region14: #{multi_headed_attention.1} parent=1 // pred_check
      _
    $region15: #{multi_headed_attention.1} parent=1 // pred_check_branch
      %17 = sbr.rel (0) target = $region17
    $region16: #{multi_headed_attention.1} parent=1 // pred_region
      _
    $region17: #{multi_headed_attention.1} parent=1 // pred_fallthru
      _
    %v18 = vld [vmem:[%s1] sm:$0xff]
    %v19 = vld [vmem:[%s1 + $0x8] sm:$0xff]
    %v20 = vld [vmem:[%s1 + $0x10] sm:$0xff]
    %v21 = vld [vmem:[%s1 + $0x18] sm:$0xff]
    %v22 = vld [vmem:[%s1 + $0x20] sm:$0xff]
    %v23 = vld [vmem:[%s1 + $0x28] sm:$0xff]
    %v24 = vld [vmem:[%s1 + $0x30] sm:$0xff]
    %v25 = vld [vmem:[%s1 + $0x38] sm:$0xff]
    %v26 = vld [vmem:[%s1 + $0x40] sm:$0xff]
    %v27 = vld [vmem:[%s1 + $0x48] sm:$0xff]
    %v28 = vld [vmem:[%s1 + $0x50] sm:$0xff]
    %v29 = vld [vmem:[%s1 + $0x58] sm:$0xff]
    %v30 = vld [vmem:[%s2] sm:$0x1]
    %v31 = vld [vmem:[%s0] sm:$0xff]
    %v32 = vld [vmem:[%s0 + $0x8] sm:$0xff]
    %v34 = vlaneseq
    %v35 = vshrl.u32 %v34, 7
    %v36 = vsub.s32 0, %v35
    %v37 = vrot.slane %v30, %v36
    %vm39 = vcmask 785408
    %v41 = vsel %vm39, %v31, 0
    %v44 = vsel %vm39, %v32, 0
    %46 = vmatprep.subr.mxu0 0.0
    %47 = vmatpush1.msra.mxu0 %v18
    %48 = vmatprep.subr.mxu0 0.0
    %49 = vmatpush1.msra.mxu0 %v19
    %50 = vmatprep.subr.mxu0 0.0
    %51 = vmatpush1.msra.mxu0 %v20
    %52 = vmatprep.subr.mxu0 0.0
    %53 = vmatpush1.msra.mxu0 %v21
    %54 = vmatprep.subr.mxu0 0.0
    %55 = vmatpush1.msra.mxu0 %v22
    %56 = vmatprep.subr.mxu0 0.0
    %57 = vmatpush1.msra.mxu0 %v23
    %58 = vmatprep.subr.mxu0 0.0
    %59 = vmatpush1.msra.mxu0 %v24
    %60 = vmatprep.subr.mxu0 0.0
    %61 = vmatpush1.msra.mxu0 %v25
    %62 = vmatprep.subr.mxu0 0.0
    %63 = vmatpush1.msra.mxu0 %v26
    %64 = vmatprep.subr.mxu0 0.0
    %65 = vmatpush1.msra.mxu0 %v27
    %66 = vmatprep.subr.mxu0 0.0
    %67 = vmatpush1.msra.mxu0 %v28
    %68 = vmatprep.subr.mxu0 0.0
    %69 = vmatpush1.msra.mxu0 %v29
    %70 = vmatprep.subr.mxu0 0.0
    %71 = vmatpush1.msra.mxu0 0.0
    %72 = vmatprep.subr.mxu0 0.0
    %73 = vmatpush1.msra.mxu0 0.0
    %74 = vmatprep.subr.mxu0 0.0
    %75 = vmatpush1.msra.mxu0 0.0
    %76 = vmatprep.subr.mxu0 0.0
    %77 = vmatpush1.msra.mxu0 0.0
    %78 = vmatprep.subr.mxu0 0.0
    %79 = vmatpush1.msra.mxu0 0.0
    %80 = vmatprep.subr.mxu0 0.0
    %81 = vmatpush1.msra.mxu0 0.0
    %82 = vmatprep.subr.mxu0 0.0
    %83 = vmatpush1.msra.mxu0 0.0
    %84 = vmatprep.subr.mxu0 0.0
    %85 = vmatpush1.msra.mxu0 0.0
    %86 = vmatprep.subr.mxu0 0.0
    %87 = vmatpush1.msra.mxu0 0.0
    %88 = vmatprep.subr.mxu0 0.0
    %89 = vmatpush1.msra.mxu0 0.0
    %90 = vmatprep.subr.mxu0 0.0
    %91 = vmatpush1.msra.mxu0 0.0
    %92 = vmatprep.subr.mxu0 0.0
    %93 = vmatpush1.msra.mxu0 0.0
    %94 = vmatprep.subr.mxu0 0.0
    %95 = vmatpush1.msra.mxu0 0.0
    %96 = vmatprep.subr.mxu0 0.0
    %97 = vmatpush1.msra.mxu0 0.0
    %98 = vmatprep.subr.mxu0 0.0
    %99 = vmatpush1.msra.mxu0 0.0
    %100 = vmatprep.subr.mxu0 0.0
    %101 = vmatpush1.msra.mxu0 0.0
    %102 = vmatprep.subr.mxu0 0.0
    %103 = vmatpush1.msra.mxu0 0.0
    %104 = vmatprep.subr.mxu0 0.0
    %105 = vmatpush1.msra.mxu0 0.0
    %106 = vmatprep.subr.mxu0 0.0
    %107 = vmatpush1.msra.mxu0 0.0
    %108 = vmatprep.subr.mxu0 0.0
    %109 = vmatpush1.msra.mxu0 0.0
    %110 = vmatprep.mubr.f32.mxu0 0.0
    %111 = vmatmul.mubr.f32.gmra.mrb[0].mxu0 %v41
    %v112 = vpop.f32.mrb[0].mxu0
    %v113 = vadd.f32 %v37, %v112
    %v114 = vpop.f32.mrb[0].mxu0
    %115 = vmatprep.mubr.f32.mxu0 0.0
    %116 = vmatmul.mubr.f32.gmra.mrb[0].mxu0 %v44
    %v117 = vpop.f32.mrb[0].mxu0
    %v118 = vadd.f32 %v37, %v117
    %v119 = vpop.f32.mrb[0].mxu0
    %120 = vdwg.mxu0
    %v121 = vlaneseq
    %v122 = vshrl.u32 %v121, 7
    %v123 = vadd.s32 %v122, 8
    %v124 = vadd.s32 %v122, 16
    %v125 = vadd.s32 %v122, 24
    %v126 = vadd.s32 %v122, 32
    %v127 = vadd.s32 %v122, 40
    %v128 = vadd.s32 %v122, 48
    %v129 = vadd.s32 %v122, 56
    %v130 = vshra.s32 %v122, 4
    %v131 = vshra.s32 %v123, 4
    %v132 = vshra.s32 %v124, 4
    %v133 = vshra.s32 %v125, 4
    %v134 = vshra.s32 %v126, 4
    %v135 = vshra.s32 %v127, 4
    %v136 = vshra.s32 %v128, 4
    %v137 = vshra.s32 %v129, 4
    %v138 = vlaneseq
    %v139 = vand.u32 %v138, 127
    %v140 = vshra.s32 %v139, 3
    %vm141 = vcmp.eq.s32.totalorder %v130, %v140
    %vm142 = vcmp.eq.s32.totalorder %v131, %v140
    %vm143 = vcmp.eq.s32.totalorder %v132, %v140
    %vm144 = vcmp.eq.s32.totalorder %v133, %v140
    %vm145 = vcmp.eq.s32.totalorder %v134, %v140
    %vm146 = vcmp.eq.s32.totalorder %v135, %v140
    %vm147 = vcmp.eq.s32.totalorder %v136, %v140
    %vm148 = vcmp.eq.s32.totalorder %v137, %v140
    %151 = vrot.lane.b32.xlu0 %v113, 96
    %v152 = vpop.permute.xlu0 %151
    %153 = vrot.lane.b32.xlu0 %v118, 96
    %v154 = vpop.permute.xlu0 %153
    %v157 = vsel %vm141, %v152, 0.0
    %v158 = vsel %vm142, %v154, 0.0
    %v159 = vsel %vm143, %v152, 0.0
    %v160 = vsel %vm144, %v154, 0.0
    %v161 = vsel %vm145, %v152, 0.0
    %v162 = vsel %vm146, %v154, 0.0
    %v163 = vsel %vm147, %v152, 0.0
    %v164 = vsel %vm148, %v154, 0.0
    %v165 = vld [vmem:[%s3] sm:$0xff]
    %v166 = vld [vmem:[%s3 + $0x8] sm:$0xff]
    %v167 = vld [vmem:[%s3 + $0x10] sm:$0xff]
    %v168 = vld [vmem:[%s3 + $0x18] sm:$0xff]
    %v169 = vld [vmem:[%s3 + $0x20] sm:$0xff]
    %v170 = vld [vmem:[%s3 + $0x28] sm:$0xff]
    %v171 = vld [vmem:[%s3 + $0x30] sm:$0xff]
    %v172 = vld [vmem:[%s3 + $0x38] sm:$0xff]
    %vm173 = vcmask 261120
    %v175 = vsel %vm173, %v157, 0
    %v178 = vsel %vm173, %v158, 0
    %v181 = vsel %vm173, %v159, 0
    %v184 = vsel %vm173, %v160, 0
    %v187 = vsel %vm173, %v161, 0
    %v190 = vsel %vm173, %v162, 0
    %v193 = vsel %vm173, %v163, 0
    %v196 = vsel %vm173, %v164, 0
    %v198 = vsel %vm173, %v113, 0
    %v200 = vsel %vm173, %v118, 0
    %202 = vmatprep.subr.mxu0 0.0
    %203 = vmatpush1.xpose.msra.mxu0 %v198
    %204 = vmatprep.subr.mxu0 0.0
    %205 = vmatpush1.xpose.msra.mxu0 %v200
    %206 = vmatprep.subr.mxu0 0.0
    %207 = vmatpush1.xpose.msra.mxu0 0.0
    %208 = vmatprep.subr.mxu0 0.0
    %209 = vmatpush1.xpose.msra.mxu0 0.0
    %210 = vmatprep.subr.mxu0 0.0
    %211 = vmatpush1.xpose.msra.mxu0 0.0
    %212 = vmatprep.subr.mxu0 0.0
    %213 = vmatpush1.xpose.msra.mxu0 0.0
    %214 = vmatprep.subr.mxu0 0.0
    %215 = vmatpush1.xpose.msra.mxu0 0.0
    %216 = vmatprep.subr.mxu0 0.0
    %217 = vmatpush1.xpose.msra.mxu0 0.0
    %218 = vmatprep.subr.mxu0 0.0
    %219 = vmatpush1.xpose.msra.mxu0 0.0
    %220 = vmatprep.subr.mxu0 0.0
    %221 = vmatpush1.xpose.msra.mxu0 0.0
    %222 = vmatprep.subr.mxu0 0.0
    %223 = vmatpush1.xpose.msra.mxu0 0.0
    %224 = vmatprep.subr.mxu0 0.0
    %225 = vmatpush1.xpose.msra.mxu0 0.0
    %226 = vmatprep.subr.mxu0 0.0
    %227 = vmatpush1.xpose.msra.mxu0 0.0
    %228 = vmatprep.subr.mxu0 0.0
    %229 = vmatpush1.xpose.msra.mxu0 0.0
    %230 = vmatprep.subr.mxu0 0.0
    %231 = vmatpush1.xpose.msra.mxu0 0.0
    %232 = vmatprep.subr.mxu0 0.0
    %233 = vmatpush1.xpose.msra.mxu0 0.0
    %234 = vmatprep.subr.mxu0 0.0
    %235 = vmatpush1.xpose.msra.mxu0 0.0
    %236 = vmatprep.subr.mxu0 0.0
    %237 = vmatpush1.xpose.msra.mxu0 0.0
    %238 = vmatprep.subr.mxu0 0.0
    %239 = vmatpush1.xpose.msra.mxu0 0.0
    %240 = vmatprep.subr.mxu0 0.0
    %241 = vmatpush1.xpose.msra.mxu0 0.0
    %242 = vmatprep.subr.mxu0 0.0
    %243 = vmatpush1.xpose.msra.mxu0 0.0
    %244 = vmatprep.subr.mxu0 0.0
    %245 = vmatpush1.xpose.msra.mxu0 0.0
    %246 = vmatprep.subr.mxu0 0.0
    %247 = vmatpush1.xpose.msra.mxu0 0.0
    %248 = vmatprep.subr.mxu0 0.0
    %249 = vmatpush1.xpose.msra.mxu0 0.0
    %250 = vmatprep.subr.mxu0 0.0
    %251 = vmatpush1.xpose.msra.mxu0 0.0
    %252 = vmatprep.subr.mxu0 0.0
    %253 = vmatpush1.xpose.msra.mxu0 0.0
    %254 = vmatprep.subr.mxu0 0.0
    %255 = vmatpush1.xpose.msra.mxu0 0.0
    %256 = vmatprep.subr.mxu0 0.0
    %257 = vmatpush1.xpose.msra.mxu0 0.0
    %258 = vmatprep.subr.mxu0 0.0
    %259 = vmatpush1.xpose.msra.mxu0 0.0
    %260 = vmatprep.subr.mxu0 0.0
    %261 = vmatpush1.xpose.msra.mxu0 0.0
    %262 = vmatprep.subr.mxu0 0.0
    %263 = vmatpush1.xpose.msra.mxu0 0.0
    %264 = vmatprep.subr.mxu0 0.0
    %265 = vmatpush1.xpose.msra.mxu0 0.0
    %266 = vmatprep.mubr.f32.mxu0 0.0
    %267 = vmatmul.mubr.f32.gmra.mrb[0].mxu0 %v175
    %v268 = vpop.f32.mrb[0].mxu0
    %v269 = vadd.f32 %v165, %v268
    %v270 = vpop.f32.mrb[0].mxu0
    %271 = vmatprep.mubr.f32.mxu0 0.0
    %272 = vmatmul.mubr.f32.gmra.mrb[0].mxu0 %v178
    %v273 = vpop.f32.mrb[0].mxu0
    %v274 = vadd.f32 %v166, %v273
    %v275 = vpop.f32.mrb[0].mxu0
    %276 = vmatprep.mubr.f32.mxu0 0.0
    %277 = vmatmul.mubr.f32.gmra.mrb[0].mxu0 %v181
    %v278 = vpop.f32.mrb[0].mxu0
    %v279 = vadd.f32 %v167, %v278
    %v280 = vpop.f32.mrb[0].mxu0
    %281 = vmatprep.mubr.f32.mxu0 0.0
    %282 = vmatmul.mubr.f32.gmra.mrb[0].mxu0 %v184
    %v283 = vpop.f32.mrb[0].mxu0
    %v284 = vadd.f32 %v168, %v283
    %v285 = vpop.f32.mrb[0].mxu0
    %286 = vmatprep.mubr.f32.mxu0 0.0
    %287 = vmatmul.mubr.f32.gmra.mrb[0].mxu0 %v187
    %v288 = vpop.f32.mrb[0].mxu0
    %v289 = vadd.f32 %v169, %v288
    %v290 = vpop.f32.mrb[0].mxu0
    %291 = vmatprep.mubr.f32.mxu0 0.0
    %292 = vmatmul.mubr.f32.gmra.mrb[0].mxu0 %v190
    %v293 = vpop.f32.mrb[0].mxu0
    %v294 = vadd.f32 %v170, %v293
    %v295 = vpop.f32.mrb[0].mxu0
    %296 = vmatprep.mubr.f32.mxu0 0.0
    %297 = vmatmul.mubr.f32.gmra.mrb[0].mxu0 %v193
    %v298 = vpop.f32.mrb[0].mxu0
    %v299 = vadd.f32 %v171, %v298
    %v300 = vpop.f32.mrb[0].mxu0
    %301 = vmatprep.mubr.f32.mxu0 0.0
    %302 = vmatmul.mubr.f32.gmra.mrb[0].mxu0 %v196
    %v303 = vpop.f32.mrb[0].mxu0
    %v304 = vadd.f32 %v172, %v303
    %v305 = vpop.f32.mrb[0].mxu0
    %306 = vdwg.mxu0
    %vm307 = vcmask 130048
    %v308 = vsel %vm307, %v269, -inf
    %309 = vmax.xlane.f32.xlu0 %v308
    %v310 = vpop.xlane.xlu0 %309
    %v311 = vsel %vm307, %v274, -inf
    %312 = vmax.xlane.f32.xlu0 %v311
    %v313 = vpop.xlane.xlu0 %312
    %v314 = vsel %vm307, %v279, -inf
    %315 = vmax.xlane.f32.xlu0 %v314
    %v316 = vpop.xlane.xlu0 %315
    %v317 = vsel %vm307, %v284, -inf
    %318 = vmax.xlane.f32.xlu0 %v317
    %v319 = vpop.xlane.xlu0 %318
    %v320 = vsel %vm307, %v289, -inf
    %321 = vmax.xlane.f32.xlu0 %v320
    %v322 = vpop.xlane.xlu0 %321
    %v323 = vsel %vm307, %v294, -inf
    %324 = vmax.xlane.f32.xlu0 %v323
    %v325 = vpop.xlane.xlu0 %324
    %v326 = vsel %vm307, %v299, -inf
    %327 = vmax.xlane.f32.xlu0 %v326
    %v328 = vpop.xlane.xlu0 %327
    %v329 = vsel %vm307, %v304, -inf
    %330 = vmax.xlane.f32.xlu0 %v329
    %v331 = vpop.xlane.xlu0 %330
    %v332 = vsub.f32 %v269, %v310
    %v333 = vsub.f32 %v274, %v313
    %v334 = vsub.f32 %v279, %v316
    %v335 = vsub.f32 %v284, %v319
    %v336 = vsub.f32 %v289, %v322
    %v337 = vsub.f32 %v294, %v325
    %v338 = vsub.f32 %v299, %v328
    %v339 = vsub.f32 %v304, %v331
    %v340 = vmul.f32 %v332, 1.442695
    %v341 = vpow.pop %v340
    %v342 = vmul.f32 %v333, 1.442695
    %v343 = vpow.pop %v342
    %v344 = vmul.f32 %v334, 1.442695
    %v345 = vpow.pop %v344
    %v346 = vmul.f32 %v335, 1.442695
    %v347 = vpow.pop %v346
    %v348 = vmul.f32 %v336, 1.442695
    %v349 = vpow.pop %v348
    %v350 = vmul.f32 %v337, 1.442695
    %v351 = vpow.pop %v350
    %v352 = vmul.f32 %v338, 1.442695
    %v353 = vpow.pop %v352
    %v354 = vmul.f32 %v339, 1.442695
    %v355 = vpow.pop %v354
    %v356 = vsel %vm307, %v341, 0.0
    %357 = vadd.xlane.f32.xlu0 %v356
    %v358 = vpop.xlane.xlu0 %357
    %v359 = vsel %vm307, %v343, 0.0
    %360 = vadd.xlane.f32.xlu0 %v359
    %v361 = vpop.xlane.xlu0 %360
    %v362 = vsel %vm307, %v345, 0.0
    %363 = vadd.xlane.f32.xlu0 %v362
    %v364 = vpop.xlane.xlu0 %363
    %v365 = vsel %vm307, %v347, 0.0
    %366 = vadd.xlane.f32.xlu0 %v365
    %v367 = vpop.xlane.xlu0 %366
    %v368 = vsel %vm307, %v349, 0.0
    %369 = vadd.xlane.f32.xlu0 %v368
    %v370 = vpop.xlane.xlu0 %369
    %v371 = vsel %vm307, %v351, 0.0
    %372 = vadd.xlane.f32.xlu0 %v371
    %v373 = vpop.xlane.xlu0 %372
    %v374 = vsel %vm307, %v353, 0.0
    %375 = vadd.xlane.f32.xlu0 %v374
    %v376 = vpop.xlane.xlu0 %375
    %v377 = vsel %vm307, %v355, 0.0
    %378 = vadd.xlane.f32.xlu0 %v377
    %v379 = vpop.xlane.xlu0 %378
    %v380 = vrcp.pop %v358
    %v381 = vrcp.pop %v361
    %v382 = vrcp.pop %v364
    %v383 = vrcp.pop %v367
    %v384 = vrcp.pop %v370
    %v385 = vrcp.pop %v373
    %v386 = vrcp.pop %v376
    %v387 = vrcp.pop %v379
    %v388 = vmul.f32 %v358, %v380
    %v389 = vmul.f32 %v361, %v381
    %v390 = vmul.f32 %v364, %v382
    %v391 = vmul.f32 %v367, %v383
    %v392 = vmul.f32 %v370, %v384
    %v393 = vmul.f32 %v373, %v385
    %v394 = vmul.f32 %v376, %v386
    %v395 = vmul.f32 %v379, %v387
    %v396 = vsub.f32 2.0, %v388
    %v397 = vsub.f32 2.0, %v389
    %v398 = vsub.f32 2.0, %v390
    %v399 = vsub.f32 2.0, %v391
    %v400 = vsub.f32 2.0, %v392
    %v401 = vsub.f32 2.0, %v393
    %v402 = vsub.f32 2.0, %v394
    %v403 = vsub.f32 2.0, %v395
    %v404 = vmul.f32 %v380, %v396
    %v405 = vmul.f32 %v381, %v397
    %v406 = vmul.f32 %v382, %v398
    %v407 = vmul.f32 %v383, %v399
    %v408 = vmul.f32 %v384, %v400
    %v409 = vmul.f32 %v385, %v401
    %v410 = vmul.f32 %v386, %v402
    %v411 = vmul.f32 %v387, %v403
    %v412 = vmul.f32 %v341, %v404
    %v413 = vmul.f32 %v343, %v405
    %v414 = vmul.f32 %v345, %v406
    %v415 = vmul.f32 %v347, %v407
    %v416 = vmul.f32 %v349, %v408
    %v417 = vmul.f32 %v351, %v409
    %v418 = vmul.f32 %v353, %v410
    %v419 = vmul.f32 %v355, %v411
    %420 = vrot.lane.b32.xlu0 %v113, 64
    %v421 = vpop.permute.xlu0 %420
    %422 = vrot.lane.b32.xlu0 %v118, 64
    %v423 = vpop.permute.xlu0 %422
    %v427 = vsel %vm307, %v412, 0
    %v430 = vsel %vm307, %v413, 0
    %v433 = vsel %vm307, %v414, 0
    %v436 = vsel %vm307, %v415, 0
    %v439 = vsel %vm307, %v416, 0
    %v442 = vsel %vm307, %v417, 0
    %v445 = vsel %vm307, %v418, 0
    %v448 = vsel %vm307, %v419, 0
    %450 = vmatprep.subr.mxu0 0.0
    %451 = vmatpush1.msra.mxu0 %v421
    %452 = vmatprep.subr.mxu0 0.0
    %453 = vmatpush1.msra.mxu0 %v423
    %454 = vmatprep.subr.mxu0 0.0
    %455 = vmatpush1.msra.mxu0 0.0
    %456 = vmatprep.subr.mxu0 0.0
    %457 = vmatpush1.msra.mxu0 0.0
    %458 = vmatprep.subr.mxu0 0.0
    %459 = vmatpush1.msra.mxu0 0.0
    %460 = vmatprep.subr.mxu0 0.0
    %461 = vmatpush1.msra.mxu0 0.0
    %462 = vmatprep.subr.mxu0 0.0
    %463 = vmatpush1.msra.mxu0 0.0
    %464 = vmatprep.subr.mxu0 0.0
    %465 = vmatpush1.msra.mxu0 0.0
    %466 = vmatprep.subr.mxu0 0.0
    %467 = vmatpush1.msra.mxu0 0.0
    %468 = vmatprep.subr.mxu0 0.0
    %469 = vmatpush1.msra.mxu0 0.0
    %470 = vmatprep.subr.mxu0 0.0
    %471 = vmatpush1.msra.mxu0 0.0
    %472 = vmatprep.subr.mxu0 0.0
    %473 = vmatpush1.msra.mxu0 0.0
    %474 = vmatprep.subr.mxu0 0.0
    %475 = vmatpush1.msra.mxu0 0.0
    %476 = vmatprep.subr.mxu0 0.0
    %477 = vmatpush1.msra.mxu0 0.0
    %478 = vmatprep.subr.mxu0 0.0
    %479 = vmatpush1.msra.mxu0 0.0
    %480 = vmatprep.subr.mxu0 0.0
    %481 = vmatpush1.msra.mxu0 0.0
    %482 = vmatprep.subr.mxu0 0.0
    %483 = vmatpush1.msra.mxu0 0.0
    %484 = vmatprep.subr.mxu0 0.0
    %485 = vmatpush1.msra.mxu0 0.0
    %486 = vmatprep.subr.mxu0 0.0
    %487 = vmatpush1.msra.mxu0 0.0
    %488 = vmatprep.subr.mxu0 0.0
    %489 = vmatpush1.msra.mxu0 0.0
    %490 = vmatprep.subr.mxu0 0.0
    %491 = vmatpush1.msra.mxu0 0.0
    %492 = vmatprep.subr.mxu0 0.0
    %493 = vmatpush1.msra.mxu0 0.0
    %494 = vmatprep.subr.mxu0 0.0
    %495 = vmatpush1.msra.mxu0 0.0
    %496 = vmatprep.subr.mxu0 0.0
    %497 = vmatpush1.msra.mxu0 0.0
    %498 = vmatprep.subr.mxu0 0.0
    %499 = vmatpush1.msra.mxu0 0.0
    %500 = vmatprep.subr.mxu0 0.0
    %501 = vmatpush1.msra.mxu0 0.0
    %502 = vmatprep.subr.mxu0 0.0
    %503 = vmatpush1.msra.mxu0 0.0
    %504 = vmatprep.subr.mxu0 0.0
    %505 = vmatpush1.msra.mxu0 0.0
    %506 = vmatprep.subr.mxu0 0.0
    %507 = vmatpush1.msra.mxu0 0.0
    %508 = vmatprep.subr.mxu0 0.0
    %509 = vmatpush1.msra.mxu0 0.0
    %510 = vmatprep.subr.mxu0 0.0
    %511 = vmatpush1.msra.mxu0 0.0
    %512 = vmatprep.subr.mxu0 0.0
    %513 = vmatpush1.msra.mxu0 0.0
    %514 = vmatprep.mubr.f32.mxu0 0.0
    %515 = vmatmul.mubr.f32.gmra.mrb[0].mxu0 %v427
    %v516 = vpop.f32.mrb[0].mxu0
    %v517 = vadd.f32 0.0, %v516
    %v518 = vpop.f32.mrb[0].mxu0
    %519 = vmatprep.mubr.f32.mxu0 0.0
    %520 = vmatmul.mubr.f32.gmra.mrb[0].mxu0 %v430
    %v521 = vpop.f32.mrb[0].mxu0
    %v522 = vadd.f32 0.0, %v521
    %v523 = vpop.f32.mrb[0].mxu0
    %524 = vmatprep.mubr.f32.mxu0 0.0
    %525 = vmatmul.mubr.f32.gmra.mrb[0].mxu0 %v433
    %v526 = vpop.f32.mrb[0].mxu0
    %v527 = vadd.f32 0.0, %v526
    %v528 = vpop.f32.mrb[0].mxu0
    %529 = vmatprep.mubr.f32.mxu0 0.0
    %530 = vmatmul.mubr.f32.gmra.mrb[0].mxu0 %v436
    %v531 = vpop.f32.mrb[0].mxu0
    %v532 = vadd.f32 0.0, %v531
    %v533 = vpop.f32.mrb[0].mxu0
    %534 = vmatprep.mubr.f32.mxu0 0.0
    %535 = vmatmul.mubr.f32.gmra.mrb[0].mxu0 %v439
    %v536 = vpop.f32.mrb[0].mxu0
    %v537 = vadd.f32 0.0, %v536
    %v538 = vpop.f32.mrb[0].mxu0
    %539 = vmatprep.mubr.f32.mxu0 0.0
    %540 = vmatmul.mubr.f32.gmra.mrb[0].mxu0 %v442
    %v541 = vpop.f32.mrb[0].mxu0
    %v542 = vadd.f32 0.0, %v541
    %v543 = vpop.f32.mrb[0].mxu0
    %544 = vmatprep.mubr.f32.mxu0 0.0
    %545 = vmatmul.mubr.f32.gmra.mrb[0].mxu0 %v445
    %v546 = vpop.f32.mrb[0].mxu0
    %v547 = vadd.f32 0.0, %v546
    %v548 = vpop.f32.mrb[0].mxu0
    %549 = vmatprep.mubr.f32.mxu0 0.0
    %550 = vmatmul.mubr.f32.gmra.mrb[0].mxu0 %v448
    %v551 = vpop.f32.mrb[0].mxu0
    %v552 = vadd.f32 0.0, %v551
    %v553 = vpop.f32.mrb[0].mxu0
    %554 = vdwg.mxu0
    %v555 = vsel %vm141, %v517, 0.0
    %v556 = vsel %vm142, %v522, 0.0
    %v557 = vsel %vm143, %v527, 0.0
    %v558 = vsel %vm144, %v532, 0.0
    %v559 = vsel %vm145, %v537, 0.0
    %v560 = vsel %vm146, %v542, 0.0
    %v561 = vsel %vm147, %v547, 0.0
    %v562 = vsel %vm148, %v552, 0.0
    %v563 = vadd.f32 %v555, %v557
    %v564 = vadd.f32 %v556, %v558
    %v565 = vadd.f32 %v563, %v559
    %v566 = vadd.f32 %v564, %v560
    %v567 = vadd.f32 %v565, %v561
    %v568 = vadd.f32 %v566, %v562
    %v569 = vld [vmem:[%s1 + $0x60] sm:$0xff]
    %v570 = vld [vmem:[%s1 + $0x68] sm:$0xff]
    %v571 = vld [vmem:[%s1 + $0x70] sm:$0xff]
    %v572 = vld [vmem:[%s1 + $0x78] sm:$0xff]
    %573 = vrot.lane.b32.xlu0 %v37, 32
    %v574 = vpop.permute.xlu0 %573
    %v577 = vsel %vm173, %v567, 0
    %v580 = vsel %vm173, %v568, 0
    %582 = vmatprep.subr.mxu0 0.0
    %583 = vmatpush1.msra.mxu0 %v569
    %584 = vmatprep.subr.mxu0 0.0
    %585 = vmatpush1.msra.mxu0 %v570
    %586 = vmatprep.subr.mxu0 0.0
    %587 = vmatpush1.msra.mxu0 %v571
    %588 = vmatprep.subr.mxu0 0.0
    %589 = vmatpush1.msra.mxu0 %v572
    %590 = vmatprep.subr.mxu0 0.0
    %591 = vmatpush1.msra.mxu0 0.0
    %592 = vmatprep.subr.mxu0 0.0
    %593 = vmatpush1.msra.mxu0 0.0
    %594 = vmatprep.subr.mxu0 0.0
    %595 = vmatpush1.msra.mxu0 0.0
    %596 = vmatprep.subr.mxu0 0.0
    %597 = vmatpush1.msra.mxu0 0.0
    %598 = vmatprep.subr.mxu0 0.0
    %599 = vmatpush1.msra.mxu0 0.0
    %600 = vmatprep.subr.mxu0 0.0
    %601 = vmatpush1.msra.mxu0 0.0
    %602 = vmatprep.subr.mxu0 0.0
    %603 = vmatpush1.msra.mxu0 0.0
    %604 = vmatprep.subr.mxu0 0.0
    %605 = vmatpush1.msra.mxu0 0.0
    %606 = vmatprep.subr.mxu0 0.0
    %607 = vmatpush1.msra.mxu0 0.0
    %608 = vmatprep.subr.mxu0 0.0
    %609 = vmatpush1.msra.mxu0 0.0
    %610 = vmatprep.subr.mxu0 0.0
    %611 = vmatpush1.msra.mxu0 0.0
    %612 = vmatprep.subr.mxu0 0.0
    %613 = vmatpush1.msra.mxu0 0.0
    %614 = vmatprep.subr.mxu0 0.0
    %615 = vmatpush1.msra.mxu0 0.0
    %616 = vmatprep.subr.mxu0 0.0
    %617 = vmatpush1.msra.mxu0 0.0
    %618 = vmatprep.subr.mxu0 0.0
    %619 = vmatpush1.msra.mxu0 0.0
    %620 = vmatprep.subr.mxu0 0.0
    %621 = vmatpush1.msra.mxu0 0.0
    %622 = vmatprep.subr.mxu0 0.0
    %623 = vmatpush1.msra.mxu0 0.0
    %624 = vmatprep.subr.mxu0 0.0
    %625 = vmatpush1.msra.mxu0 0.0
    %626 = vmatprep.subr.mxu0 0.0
    %627 = vmatpush1.msra.mxu0 0.0
    %628 = vmatprep.subr.mxu0 0.0
    %629 = vmatpush1.msra.mxu0 0.0
    %630 = vmatprep.subr.mxu0 0.0
    %631 = vmatpush1.msra.mxu0 0.0
    %632 = vmatprep.subr.mxu0 0.0
    %633 = vmatpush1.msra.mxu0 0.0
    %634 = vmatprep.subr.mxu0 0.0
    %635 = vmatpush1.msra.mxu0 0.0
    %636 = vmatprep.subr.mxu0 0.0
    %637 = vmatpush1.msra.mxu0 0.0
    %638 = vmatprep.subr.mxu0 0.0
    %639 = vmatpush1.msra.mxu0 0.0
    %640 = vmatprep.subr.mxu0 0.0
    %641 = vmatpush1.msra.mxu0 0.0
    %642 = vmatprep.subr.mxu0 0.0
    %643 = vmatpush1.msra.mxu0 0.0
    %644 = vmatprep.subr.mxu0 0.0
    %645 = vmatpush1.msra.mxu0 0.0
    %646 = vmatprep.mubr.f32.mxu0 0.0
    %647 = vmatmul.mubr.f32.gmra.mrb[0].mxu0 %v577
    %v648 = vpop.f32.mrb[0].mxu0
    %v649 = vadd.f32 %v574, %v648
    %v650 = vpop.f32.mrb[0].mxu0
    %651 = vmatprep.mubr.f32.mxu0 0.0
    %652 = vmatmul.mubr.f32.gmra.mrb[0].mxu0 %v580
    %v653 = vpop.f32.mrb[0].mxu0
    %v654 = vadd.f32 %v574, %v653
    %v655 = vpop.f32.mrb[0].mxu0
    %656 = vdwg.mxu0
    %657 = vst.msk [vmem:[#allocation2] sm:$0xff] %vm173, %v649
    %658 = vst.msk [vmem:[#allocation2 + $0x8] sm:$0xff] %vm173, %v654
    // Predicated region
    $region18: #{multi_headed_attention.1} parent=1 // pred_check
      _
    $region19: #{multi_headed_attention.1} parent=1 // pred_check_branch
      %660 = sbr.rel (0) target = $region21
    $region20: #{multi_headed_attention.1} parent=1 // pred_region
      %s662 = ssub.s32 256, 256
      %663 = vsyncadd [#allocation3], %s662
      %s664 = sshll.u32 [#allocation2], 4
      %s665 = int_to_ptr.vmem [resolvable:$true] %s664
      %670 = dma.vmem_to_hbm [thread:$0]  %s665, 256, %s4, [#allocation3], 128, 128, 8
    $region21: #{multi_headed_attention.1} parent=1 // pred_fallthru
      _
    // Predicated region
    $region22: #{multi_headed_attention.1} parent=1 // pred_check
      _
    $region23: #{multi_headed_attention.1} parent=1 // pred_check_branch
      %672 = sbr.rel (0) target = $region25
    $region24: #{multi_headed_attention.1} parent=1 // pred_region
      %673 = dma.done [#allocation3], 256
    $region25: #{multi_headed_attention.1} parent=1 // pred_fallthru
      _
    %674 = vsyncpa [#allocation3], 1

</llo_original>
